<compile_context>
chip_gen: v7x
topology: tpu7x:2x2x1
jax: 0.10.0
libtpu: 0.0.40
codegen_flags: <defaults>
</compile_context>

<pallas_src>
import jax
import jax.numpy as jnp
from jax.experimental import pallas as pl
from jax.experimental.pallas import tpu as pltpu


def net1_fused_kernel(x_ref, w_ref, b_ref, o_ref):
    # x_ref : (tn, f)  activation tile (narrow last dim; lane-padded only in VMEM)
    # w_ref : (f, f)   fused weight, already transposed to (in, out) = (W2 @ W1).T
    # b_ref : (1, f)   fused bias  b1 @ W2.T + b2   (f32)
    # o_ref : (tn, f)
    y = jnp.dot(x_ref[...], w_ref[...], preferred_element_type=jnp.float32)
    y = y + b_ref[...]                      # (1, f) broadcasts over rows (VPU, cheap)
    o_ref[...] = y.astype(o_ref.dtype)


def net1_forward(x, w1, b1, w2, b2, *, tile_n=4096, min_rows_for_pallas=0):
    """Forward pass of Net1.  Weights in PyTorch layout: w (out, in), b (out,).

    tile_n: batch tile.  4096 is a good default on all generations (VMEM use is
            tiny since F=10).  v7x: 4096-8192; v5e: 2048-4096 is already at
            roofline.
    min_rows_for_pallas: below this batch size, dispatch a plain jnp expression
            (XLA fuses it for free) instead of paying kernel-launch overhead.
            Set to e.g. 1024 in production; 0 here so the kernel always runs.
    """
    n, f = x.shape
    out_dtype = x.dtype
    # bf16 stays bf16 (MXU-native, halves HBM bytes); everything else runs f32.
    compute_dtype = jnp.bfloat16 if x.dtype == jnp.bfloat16 else jnp.float32

    # ---- Algebraic fusion (exact -- no nonlinearity between the layers) ----
    # (x @ W1.T + b1) @ W2.T + b2  ==  x @ (W2 @ W1).T + (b1 @ W2.T + b2)
    w1f = w1.astype(jnp.float32)
    w2f = w2.astype(jnp.float32)
    w_fused_t = (w2f @ w1f).T.astype(compute_dtype)                      # (f_in, f_out)
    b_fused = (b1.astype(jnp.float32) @ w2f.T
               + b2.astype(jnp.float32)).reshape(1, f)                   # (1, f), f32

    x_c = x.astype(compute_dtype)   # no-op for f32 and bf16 inputs

    if n < min_rows_for_pallas:
        # Tiny-batch fallback: a single fused XLA dot is cheaper than a launch.
        return (x_c @ w_fused_t + b_fused).astype(out_dtype)

    # ---- Batch tiling: no padding, partial last block allowed ----
    tn = min(int(tile_n), n)
    if tn < n:
        tn = max(8, (tn // 8) * 8)   # multi-block: tile rows must be a multiple of 8
    # (when tn == n the single block equals the full array dims, which is legal
    #  for any n, so no batch padding is ever materialized)
    grid = (pl.cdiv(n, tn),)

    out = pl.pallas_call(
        net1_fused_kernel,
        out_shape=jax.ShapeDtypeStruct((n, f), out_dtype),
        grid_spec=pltpu.PrefetchScalarGridSpec(
            num_scalar_prefetch=0,
            grid=grid,
            in_specs=[
                pl.BlockSpec((tn, f), lambda i: (i, 0)),   # x tile streams over batch
                pl.BlockSpec((f, f), lambda i: (0, 0)),    # fused W^T: constant index -> DMA'd once
                pl.BlockSpec((1, f), lambda i: (0, 0)),    # fused bias: constant index -> DMA'd once
            ],
            out_specs=pl.BlockSpec((tn, f), lambda i: (i, 0)),
        ),
        compiler_params=pltpu.CompilerParams(
            dimension_semantics=("parallel",),   # batch axis shards across TCs (v7x)
        ),
    )(x_c, w_fused_t, b_fused)

    return out


def reference_forward(x, w1, b1, w2, b2):
    out1 = x @ w1.T + b1
    out2 = out1 @ w2.T + b2
    return out2


if __name__ == "__main__":
    key = jax.random.PRNGKey(0)
    kx1, kx2, k1w, k1b, k2w, k2b = jax.random.split(key, 6)

    F = 10  # nn.Linear(10, 10)

    # PyTorch-style init: uniform(-1/sqrt(in), 1/sqrt(in)); bias shape (out,).
    bound = 1.0 / jnp.sqrt(jnp.float32(F))
    w1 = jax.random.uniform(k1w, (F, F), jnp.float32, -bound, bound)
    b1 = jax.random.uniform(k1b, (F,), jnp.float32, -bound, bound)
    w2 = jax.random.uniform(k2w, (F, F), jnp.float32, -bound, bound)
    b2 = jax.random.uniform(k2b, (F,), jnp.float32, -bound, bound)

    fwd = jax.jit(net1_forward, static_argnames=("tile_n", "min_rows_for_pallas"))

    # Case 1: module-spec shape (batch=8, features=10) -- single block.
    x8 = jax.random.normal(kx1, (8, F), dtype=jnp.float32)
    out8 = jax.block_until_ready(fwd(x8, w1, b1, w2, b2))
    ref8 = reference_forward(x8, w1, b1, w2, b2)
    assert out8.shape == (8, F)
    assert out8.dtype == x8.dtype
    assert jnp.allclose(out8, ref8, atol=1e-4, rtol=1e-4), "mismatch vs reference (N=8)"

    # Case 2: streaming path -- multiple grid steps and a partial last block
    # (batch 52 is neither a multiple of the tile nor of 8; no padding is done).
    x52 = jax.random.normal(kx2, (52, F), dtype=jnp.float32)
    out52 = jax.block_until_ready(fwd(x52, w1, b1, w2, b2, tile_n=16))
    ref52 = reference_forward(x52, w1, b1, w2, b2)
    assert out52.shape == (52, F)
    assert jnp.allclose(out52, ref52, atol=1e-4, rtol=1e-4), "mismatch vs reference (N=52)"

    print("KERNEL_OK")
</pallas_src>

<mosaic_0001>
module attributes {stable_mosaic.version = 11 : i64} {
  func.func @net1_fused_kernel(%arg0: i32, %arg1: memref<8x10xf32, #tpu.memory_space<vmem>>, %arg2: memref<10x10xf32, #tpu.memory_space<vmem>>, %arg3: memref<1x10xf32, #tpu.memory_space<vmem>>, %arg4: memref<8x10xf32, #tpu.memory_space<vmem>>) attributes {dimension_semantics = [#tpu.dimension_semantics<parallel>], iteration_bounds = array<i64: 1>, scalar_prefetch = 0 : i64, scratch_operands = 0 : i64, tpu.core_type = #tpu.core_type<tc>, window_params = [{transform_indices = @transform_0, window_bounds = array<i64: 8, 10>}, {pipeline_mode = #tpu.pipeline_mode<synchronous>, transform_indices = @transform_1, window_bounds = array<i64: 10, 10>}, {pipeline_mode = #tpu.pipeline_mode<synchronous>, transform_indices = @transform_2, window_bounds = array<i64: 1, 10>}, {transform_indices = @transform_3, window_bounds = array<i64: 8, 10>}]} {
    %c0 = arith.constant 0 : index
    %c0_0 = arith.constant 0 : index
    %0 = vector.load %arg1[%c0, %c0_0] : memref<8x10xf32, #tpu.memory_space<vmem>>, vector<8x10xf32>
    %c0_1 = arith.constant 0 : index
    %c0_2 = arith.constant 0 : index
    %1 = vector.load %arg2[%c0_1, %c0_2] : memref<10x10xf32, #tpu.memory_space<vmem>>, vector<10x10xf32>
    %cst = arith.constant dense<0.000000e+00> : vector<8x10xf32>
    %2 = tpu.matmul %0, %1, %cst {dimension_numbers = #tpu.dot_dimension_numbers<[1], [0], [0], [1], [0, 0, 1, 1], [], []>} : vector<8x10xf32>, vector<10x10xf32>, vector<8x10xf32> -> vector<8x10xf32>
    %c0_3 = arith.constant 0 : index
    %c0_4 = arith.constant 0 : index
    %3 = vector.load %arg3[%c0_3, %c0_4] : memref<1x10xf32, #tpu.memory_space<vmem>>, vector<1x10xf32>
    %4 = vector.broadcast %3 : vector<1x10xf32> to vector<8x10xf32>
    %5 = arith.addf %2, %4 : vector<8x10xf32>
    %c0_5 = arith.constant 0 : index
    %c0_6 = arith.constant 0 : index
    %6 = vector.load %arg4[%c0_5, %c0_6] : memref<8x10xf32, #tpu.memory_space<vmem>>, vector<8x10xf32>
    tpu.vector_store %arg4[%c0_5, %c0_6], %5 {strides = array<i32>} : memref<8x10xf32, #tpu.memory_space<vmem>>, vector<8x10xf32>,
    return
  }
  func.func @transform_0(%arg0: i32) -> (i32, i32) {
    %c0_i32 = arith.constant 0 : i32
    %c0_i32_0 = arith.constant 0 : i32
    return %arg0, %c0_i32 : i32, i32
  }
  func.func @transform_1(%arg0: i32) -> (i32, i32) {
    %c0_i32 = arith.constant 0 : i32
    %c0_i32_0 = arith.constant 0 : i32
    %c0_i32_1 = arith.constant 0 : i32
    return %c0_i32, %c0_i32_0 : i32, i32
  }
  func.func @transform_2(%arg0: i32) -> (i32, i32) {
    %c0_i32 = arith.constant 0 : i32
    %c0_i32_0 = arith.constant 0 : i32
    %c0_i32_1 = arith.constant 0 : i32
    return %c0_i32, %c0_i32_0 : i32, i32
  }
  func.func @transform_3(%arg0: i32) -> (i32, i32) {
    %c0_i32 = arith.constant 0 : i32
    %c0_i32_0 = arith.constant 0 : i32
    return %arg0, %c0_i32 : i32, i32
  }
}

</mosaic_0001>

<llo_original>
// kernel: net1_forward.1
$region0: #{net1_forward.1}
  #allocation0 [shape = 'u32[]', space=smem, size = 0x4, offset = 0x4, fixed_abs, tag = 'smem constant byte address 0x4 - core index']
  #allocation1 [shape = 'u32[144,128]{1,0:T(1,128)}', space=vmem, size = 0x12000, scoped, tag = 'internal scratch']
  %s0 = inlined_call_operand.vmem [shape: f32[8,10], index: 0, kind: input, shape index: {}]
  %s1 = inlined_call_operand.vmem [shape: f32[10,10], index: 1, kind: input, shape index: {}]
  %s2 = inlined_call_operand.vmem [shape: f32[1,10], index: 2, kind: input, shape index: {}]
  %s3 = inlined_call_operand.hbm [shape: f32[8,10], index: 3, kind: output, shape index: {}]
  %s4 = sld [smem:[#allocation0]]
  $region22: #{net1_forward.1} parent=0
    _
  %s6 = ssub.s32 1, %s4
  %s7 = scalar_select 0, %s6, %s4
  $region1: #{net1_forward.1} parent=0
    #allocation2 [shape = 'u8[4096]{0}', space=vmem, size = 0x1000, scoped, tag = 'output window, operand 0, single buffered']
    #allocation3 [shape = 's32[1]{0}', space=sflag, size = 0x4, scoped, tag = 'scoped memory for net1_forward.1']
    %8 = vsyncpa [#allocation3], 0
    // Predicated region
    $region2: #{net1_forward.1} parent=1 // pred_check
      _
    $region3: #{net1_forward.1} parent=1 // pred_check_branch
      %10 = sbr.rel (0) target = $region5
    $region4: #{net1_forward.1} parent=1 // pred_region
      _
    $region5: #{net1_forward.1} parent=1 // pred_fallthru
      _
    // Predicated region
    $region6: #{net1_forward.1} parent=1 // pred_check
      _
    $region7: #{net1_forward.1} parent=1 // pred_check_branch
      %12 = sbr.rel (0) target = $region9
    $region8: #{net1_forward.1} parent=1 // pred_region
      _
    $region9: #{net1_forward.1} parent=1 // pred_fallthru
      _
    // Predicated region
    $region10: #{net1_forward.1} parent=1 // pred_check
      _
    $region11: #{net1_forward.1} parent=1 // pred_check_branch
      %14 = sbr.rel (0) target = $region13
    $region12: #{net1_forward.1} parent=1 // pred_region
      _
    $region13: #{net1_forward.1} parent=1 // pred_fallthru
      _
    %v15 = vld [vmem:[%s0] sm:$0xff]
    %v16 = vld [vmem:[%s1] sm:$0xff]
    %v17 = vld [vmem:[%s1 + $0x8] sm:$0x3]
    %v18 = vld [vmem:[%s2] sm:$0x1]
    %v20 = vlaneseq
    %v21 = vshrl.u32 %v20, 7
    %v22 = vsub.s32 0, %v21
    %v23 = vrot.slane %v18, %v22
    %vm25 = vcmask 80896
    %v27 = vsel %vm25, %v15, 0
    %vm29 = vcmask 1041408
    %v31 = vsel %vm29, %v17, 0
    %33 = vmatprep.subr.mxu0 0.0
    %34 = vmatpush1.msra.mxu0 %v16
    %35 = vmatprep.subr.mxu0 0.0
    %36 = vmatpush1.msra.mxu0 %v31
    %37 = vmatprep.subr.mxu0 0.0
    %38 = vmatpush1.msra.mxu0 0.0
    %39 = vmatprep.subr.mxu0 0.0
    %40 = vmatpush1.msra.mxu0 0.0
    %41 = vmatprep.subr.mxu0 0.0
    %42 = vmatpush1.msra.mxu0 0.0
    %43 = vmatprep.subr.mxu0 0.0
    %44 = vmatpush1.msra.mxu0 0.0
    %45 = vmatprep.subr.mxu0 0.0
    %46 = vmatpush1.msra.mxu0 0.0
    %47 = vmatprep.subr.mxu0 0.0
    %48 = vmatpush1.msra.mxu0 0.0
    %49 = vmatprep.subr.mxu0 0.0
    %50 = vmatpush1.msra.mxu0 0.0
    %51 = vmatprep.subr.mxu0 0.0
    %52 = vmatpush1.msra.mxu0 0.0
    %53 = vmatprep.subr.mxu0 0.0
    %54 = vmatpush1.msra.mxu0 0.0
    %55 = vmatprep.subr.mxu0 0.0
    %56 = vmatpush1.msra.mxu0 0.0
    %57 = vmatprep.subr.mxu0 0.0
    %58 = vmatpush1.msra.mxu0 0.0
    %59 = vmatprep.subr.mxu0 0.0
    %60 = vmatpush1.msra.mxu0 0.0
    %61 = vmatprep.subr.mxu0 0.0
    %62 = vmatpush1.msra.mxu0 0.0
    %63 = vmatprep.subr.mxu0 0.0
    %64 = vmatpush1.msra.mxu0 0.0
    %65 = vmatprep.subr.mxu0 0.0
    %66 = vmatpush1.msra.mxu0 0.0
    %67 = vmatprep.subr.mxu0 0.0
    %68 = vmatpush1.msra.mxu0 0.0
    %69 = vmatprep.subr.mxu0 0.0
    %70 = vmatpush1.msra.mxu0 0.0
    %71 = vmatprep.subr.mxu0 0.0
    %72 = vmatpush1.msra.mxu0 0.0
    %73 = vmatprep.subr.mxu0 0.0
    %74 = vmatpush1.msra.mxu0 0.0
    %75 = vmatprep.subr.mxu0 0.0
    %76 = vmatpush1.msra.mxu0 0.0
    %77 = vmatprep.subr.mxu0 0.0
    %78 = vmatpush1.msra.mxu0 0.0
    %79 = vmatprep.subr.mxu0 0.0
    %80 = vmatpush1.msra.mxu0 0.0
    %81 = vmatprep.subr.mxu0 0.0
    %82 = vmatpush1.msra.mxu0 0.0
    %83 = vmatprep.subr.mxu0 0.0
    %84 = vmatpush1.msra.mxu0 0.0
    %85 = vmatprep.subr.mxu0 0.0
    %86 = vmatpush1.msra.mxu0 0.0
    %87 = vmatprep.subr.mxu0 0.0
    %88 = vmatpush1.msra.mxu0 0.0
    %89 = vmatprep.subr.mxu0 0.0
    %90 = vmatpush1.msra.mxu0 0.0
    %91 = vmatprep.subr.mxu0 0.0
    %92 = vmatpush1.msra.mxu0 0.0
    %93 = vmatprep.subr.mxu0 0.0
    %94 = vmatpush1.msra.mxu0 0.0
    %95 = vmatprep.subr.mxu0 0.0
    %96 = vmatpush1.msra.mxu0 0.0
    %97 = vmatprep.mubr.f32.mxu0 0.0
    %98 = vmatmul.mubr.f32.gmra.mrb[0].mxu0 %v27
    %v99 = vpop.f32.mrb[0].mxu0
    %v100 = vadd.f32 %v23, %v99
    %v101 = vpop.f32.mrb[0].mxu0
    %102 = vdwg.mxu0
    %103 = vst.msk [vmem:[#allocation2] sm:$0xff] %vm25, %v100
    // Predicated region
    $region14: #{net1_forward.1} parent=1 // pred_check
      _
    $region15: #{net1_forward.1} parent=1 // pred_check_branch
      %105 = sbr.rel (0) target = $region17
    $region16: #{net1_forward.1} parent=1 // pred_region
      %s107 = ssub.s32 128, 128
      %108 = vsyncadd [#allocation3], %s107
      %s110 = sshll.u32 [#allocation2], 4
      %s111 = int_to_ptr.vmem [resolvable:$true] %s110
      %113 = dma.vmem_to_hbm [thread:$0]  %s111, 128, %s3, [#allocation3]
    $region17: #{net1_forward.1} parent=1 // pred_fallthru
      _
    // Predicated region
    $region18: #{net1_forward.1} parent=1 // pred_check
      _
    $region19: #{net1_forward.1} parent=1 // pred_check_branch
      %115 = sbr.rel (0) target = $region21
    $region20: #{net1_forward.1} parent=1 // pred_region
      %116 = dma.done [#allocation3], 128
    $region21: #{net1_forward.1} parent=1 // pred_fallthru
      _
    %117 = vsyncpa [#allocation3], 1

</llo_original>
